<compile_context>
chip_gen: v6e
topology: v6e:2x2x1
jax: 0.10.0
libtpu: 0.0.40
codegen_flags: <defaults>
</compile_context>

<pallas_src>
import functools

import jax
import jax.numpy as jnp
import numpy as np
from jax import lax
from jax.experimental import pallas as pl
from jax.experimental.pallas import tpu as pltpu

# Contract last dim of x-tile (tm, tk) with last dim of w-tile (tn, tk) -> (tm, tn).
# Native NT MXU matmul; no weight transpose (verified pattern, see header).
_DIM_NUMS = (((1,), (1,)), ((), ()))

# ---------- chip-generation constants (queried once, conservative fallbacks) --
_VMEM_CAP = 64 << 20          # assume v7x-sized per-core VMEM if query fails
_NUM_TC = 1
_LANE_GRAN = 128              # v5e MXU is 4x128^2
try:
    _VMEM_CAP = int(pltpu.get_tpu_info().vmem_capacity_bytes)
except Exception:
    pass
try:
    _kind = jax.devices()[0].device_kind.lower()
    if ("v6" in _kind) or ("v7" in _kind):
        _LANE_GRAN = 256      # 2x256^2 MXU -> keep lane tiles 256-aligned
    if "v7" in _kind:
        _NUM_TC = 2
except Exception:
    pass

if _VMEM_CAP >= (100 << 20):          # v5e / v6e: 128 MiB VMEM
    _TM_MAX, _TN_MAX, _TK_MAX = 2048, 2048, 1024
else:                                  # v7x: 64 MiB per-TensorCore VMEM
    _TM_MAX, _TN_MAX, _TK_MAX = 1024, 1024, 1024


def _round_up(v, t):
    return (v + t - 1) // t * t


def _balanced_tile(dim, tile_max, gran, base_gran=None):
    """Largest-ish tile <= tile_max that (nearly) evenly divides `dim`.

    Prefers `gran` alignment (MXU-friendly), but falls back to `base_gran`
    when that removes padding entirely (saves jnp.pad + slice HBM round trips).
    """
    if base_gran is None:
        base_gran = gran
    n = -(-dim // tile_max)                                   # number of tiles
    tile = min(_round_up(-(-dim // n), gran), _round_up(dim, gran))
    if gran != base_gran and _round_up(dim, tile) != dim:
        tile_b = min(_round_up(-(-dim // n), base_gran), _round_up(dim, base_gran))
        if _round_up(dim, tile_b) == dim:
            tile = tile_b
    return tile


def _make_single_block_kernel(has_bias):
    """Whole problem in one VMEM block: o = x @ w.T (+ b)."""
    def kernel(*refs):
        if has_bias:
            x_ref, w_ref, b_ref, o_ref = refs
        else:
            x_ref, w_ref, o_ref = refs
        out = lax.dot_general(x_ref[...], w_ref[...], _DIM_NUMS,
                              preferred_element_type=jnp.float32)
        if has_bias:
            out = out + b_ref[...]
        o_ref[...] = out.astype(o_ref.dtype)
    return kernel


def _make_tiled_kernel(has_bias, acc_in_out):
    """Tiled matmul over grid (M/tm, N/tn, K/tk); k (reduction) innermost."""
    def kernel(*refs):
        if has_bias:
            if acc_in_out:
                x_ref, w_ref, b_ref, o_ref = refs
                acc_ref = o_ref
            else:
                x_ref, w_ref, b_ref, o_ref, acc_ref = refs
        else:
            if acc_in_out:
                x_ref, w_ref, o_ref = refs
                acc_ref = o_ref
            else:
                x_ref, w_ref, o_ref, acc_ref = refs

        k = pl.program_id(2)

        @pl.when(k == 0)
        def _():
            acc_ref[...] = jnp.zeros_like(acc_ref)

        acc_ref[...] += lax.dot_general(
            x_ref[...], w_ref[...], _DIM_NUMS,
            preferred_element_type=jnp.float32)

        if has_bias or not acc_in_out:
            @pl.when(k == pl.num_programs(2) - 1)
            def _():
                if acc_in_out:
                    # f32 output already holds the accumulated matmul.
                    o_ref[...] += b_ref[...]
                else:
                    res = acc_ref[...]
                    if has_bias:
                        res = res + b_ref[...]
                    o_ref[...] = res.astype(o_ref.dtype)
    return kernel


@functools.partial(jax.jit, static_argnames=("tm", "tn", "tk"))
def linear_pallas(x, weight, bias=None, *, tm=None, tn=None, tk=None):
    """y = x @ weight.T + bias.

    x: (..., in_features), weight: (out_features, in_features),
    bias: (out_features,) or None. Returns (..., out_features).
    tm/tn/tk override the auto tile choice (mostly for testing).
    """
    orig_shape = x.shape
    N, K = weight.shape
    assert orig_shape[-1] == K

    x2 = x.reshape(-1, K)
    M = x2.shape[0]
    out_dtype = jnp.result_type(x.dtype, weight.dtype)
    has_bias = bias is not None
    auto_tiles = tm is None and tn is None and tk is None

    x_b = jnp.dtype(x2.dtype).itemsize
    w_b = jnp.dtype(weight.dtype).itemsize
    o_b = jnp.dtype(out_dtype).itemsize

    flops = 2 * M * N * K
    bytes_accessed = M * K * x_b + N * K * w_b + M * N * o_b + (N * 4 if has_bias else 0)
    cost = pl.CostEstimate(flops=flops, transcendentals=0,
                           bytes_accessed=bytes_accessed)

    # ---------- Small-problem fast path: one block, no padding. ----------
    # On 2-TC chips (v7x) only keep it for genuinely tiny problems so mid-size
    # calls still get megacore sharding via the tiled path.
    if (auto_tiles and M <= 512 and N <= 512 and K <= 1024
            and (_NUM_TC == 1 or M * N * K <= 256 * 256 * 512)):
        kernel = _make_single_block_kernel(has_bias)
        in_specs = [pl.BlockSpec((M, K), lambda i: (0, 0)),
                    pl.BlockSpec((N, K), lambda i: (0, 0))]
        args = [x2, weight]
        if has_bias:
            in_specs.append(pl.BlockSpec((1, N), lambda i: (0, 0)))
            args.append(bias.astype(jnp.float32).reshape(1, N))
        out = pl.pallas_call(
            kernel,
            out_shape=jax.ShapeDtypeStruct((M, N), out_dtype),
            grid_spec=pltpu.PrefetchScalarGridSpec(
                num_scalar_prefetch=0,
                grid=(1,),
                in_specs=in_specs,
                out_specs=pl.BlockSpec((M, N), lambda i: (0, 0))),
            compiler_params=pltpu.CompilerParams(
                dimension_semantics=("arbitrary",)),
            cost_estimate=cost,
        )(*args)
        return out.reshape(*orig_shape[:-1], N)

    # ---------- Tiled path. ----------
    if auto_tiles:
        # tm only needs sublane granularity (8 f32 / 16 bf16 / 32 int8);
        # tn/tk are lane dims -> 128 minimum, 256 preferred on v6e/v7x.
        gm = max(32 // x_b, 32 // o_b)
        tm_ = _balanced_tile(M, _TM_MAX, gm)
        tn_ = _balanced_tile(N, _TN_MAX, _LANE_GRAN, base_gran=128)
        tk_ = _balanced_tile(K, _TK_MAX, _LANE_GRAN, base_gran=128)
        # Make sure both TensorCores (v7x) get work on the parallel axes.
        if _NUM_TC > 1 and (-(-M // tm_)) * (-(-N // tn_)) < _NUM_TC:
            if M >= 2 * gm:
                tm_ = _round_up(-(-M // 2), gm)
            elif N >= 2 * 128:
                tn_ = _round_up(-(-N // 2), 128)
    else:
        tm_ = _TM_MAX if tm is None else tm
        tn_ = _TN_MAX if tn is None else tn
        tk_ = _TK_MAX if tk is None else tk

    Mp, Np, Kp = _round_up(M, tm_), _round_up(N, tn_), _round_up(K, tk_)

    # Pad only when needed (single jnp.pad op; skipped entirely for aligned shapes).
    # K-padding with zeros is safe for the reduction; bias added once at last k.
    x_p = x2 if (Mp == M and Kp == K) else jnp.pad(x2, ((0, Mp - M), (0, Kp - K)))
    w_p = weight if (Np == N and Kp == K) else jnp.pad(weight,
                                                       ((0, Np - N), (0, Kp - K)))

    acc_in_out = out_dtype == jnp.float32
    kernel = _make_tiled_kernel(has_bias, acc_in_out)

    in_specs = [pl.BlockSpec((tm_, tk_), lambda i, j, k: (i, k)),
                pl.BlockSpec((tn_, tk_), lambda i, j, k: (j, k))]
    args = [x_p, w_p]
    if has_bias:
        b2 = bias.astype(jnp.float32).reshape(1, N)
        b_p = b2 if Np == N else jnp.pad(b2, ((0, 0), (0, Np - N)))
        in_specs.append(pl.BlockSpec((1, tn_), lambda i, j, k: (0, j)))
        args.append(b_p)

    scratch = [] if acc_in_out else [pltpu.VMEM((tm_, tn_), jnp.float32)]

    # VMEM budget: double-buffered inputs + output, accumulator, bias, headroom,
    # clamped to the chip's real per-core VMEM capacity (56 MiB cap on v7x).
    vmem_bytes = (2 * (tm_ * tk_ * x_b + tn_ * tk_ * w_b)
                  + 2 * tm_ * tn_ * o_b
                  + (0 if acc_in_out else tm_ * tn_ * 4)
                  + (2 * tn_ * 4 if has_bias else 0))
    cap_limit = max(_VMEM_CAP - (8 << 20), 16 << 20)
    vmem_limit = int(min(max(vmem_bytes + (16 << 20), 32 << 20), cap_limit))

    out_p = pl.pallas_call(
        kernel,
        out_shape=jax.ShapeDtypeStruct((Mp, Np), out_dtype),
        grid_spec=pltpu.PrefetchScalarGridSpec(
            num_scalar_prefetch=0,
            grid=(Mp // tm_, Np // tn_, Kp // tk_),
            in_specs=in_specs,
            out_specs=pl.BlockSpec((tm_, tn_), lambda i, j, k: (i, j)),
            scratch_shapes=scratch),
        compiler_params=pltpu.CompilerParams(
            dimension_semantics=("parallel", "parallel", "arbitrary"),
            vmem_limit_bytes=vmem_limit),
        cost_estimate=cost,
    )(*args)

    out = out_p if (Mp == M and Np == N) else out_p[:M, :N]
    return out.reshape(*orig_shape[:-1], N)


def init_linear_params(key, in_features, out_features, bias=True,
                       dtype=jnp.float32):
    """Matches the PyTorch module: uniform(-1/sqrt(in), 1/sqrt(in))."""
    bound = 1.0 / np.sqrt(in_features)
    kw, kb = jax.random.split(key)
    weight = jax.random.uniform(kw, (out_features, in_features),
                                minval=-bound, maxval=bound, dtype=dtype)
    b = None
    if bias:
        b = jax.random.uniform(kb, (out_features,),
                               minval=-bound, maxval=bound, dtype=dtype)
    return weight, b


if __name__ == "__main__":
    key = jax.random.PRNGKey(0)
    k_x, k_p, k_x2, k_p2, k_x3, k_p3 = jax.random.split(key, 6)

    # 1) Small-shape fast path (matches the module's typical usage), with bias.
    batch, seq, in_features, out_features = 2, 8, 32, 48
    x = jax.random.normal(k_x, (batch, seq, in_features), dtype=jnp.float32)
    weight, bias = init_linear_params(k_p, in_features, out_features, bias=True)

    y = jax.block_until_ready(linear_pallas(x, weight, bias))
    y_ref = jnp.einsum("...i,ji->...j", x, weight) + bias
    assert y.shape == (batch, seq, out_features)
    np.testing.assert_allclose(np.asarray(y), np.asarray(y_ref),
                               rtol=1e-5, atol=1e-5)

    # 2) Tiled path exercised at small shapes via forced tiles (padding on
    #    M/N/K, 2-step k-reduction, bias=None specialization, acc-in-output).
    M2, K2, N2 = 96, 160, 200
    x_b2 = jax.random.normal(k_x2, (M2, K2), dtype=jnp.float32)
    w_b2, _ = init_linear_params(k_p2, K2, N2, bias=False)
    y_b2 = jax.block_until_ready(linear_pallas(x_b2, w_b2, None,
                                               tm=64, tn=128, tk=128))
    y_b2_ref = np.asarray(x_b2, np.float64) @ np.asarray(w_b2, np.float64).T
    np.testing.assert_allclose(np.asarray(y_b2), y_b2_ref, rtol=1e-4, atol=1e-4)

    # 3) Auto-tiled path with the new balanced / generation-aware tile picker
    #    (non-128-aligned M handled at sublane granularity, with bias).
    M3, K3, N3 = 300, 512, 640
    x_b3 = jax.random.normal(k_x3, (M3, K3), dtype=jnp.float32)
    w_b3, b_b3 = init_linear_params(k_p3, K3, N3, bias=True)
    y_b3 = jax.block_until_ready(linear_pallas(x_b3, w_b3, b_b3))
    y_b3_ref = (np.asarray(x_b3, np.float64) @ np.asarray(w_b3, np.float64).T
                + np.asarray(b_b3, np.float64))
    np.testing.assert_allclose(np.asarray(y_b3), y_b3_ref, rtol=1e-4, atol=1e-4)

    print("KERNEL_OK")
</pallas_src>

<mosaic_0001>
module attributes {stable_mosaic.version = 11 : i64} {
  func.func @kernel(%arg0: i32, %arg1: memref<16x32xf32, #tpu.memory_space<vmem>>, %arg2: memref<48x32xf32, #tpu.memory_space<vmem>>, %arg3: memref<1x48xf32, #tpu.memory_space<vmem>>, %arg4: memref<16x48xf32, #tpu.memory_space<vmem>>) attributes {dimension_semantics = [#tpu.dimension_semantics<arbitrary>], iteration_bounds = array<i64: 1>, scalar_prefetch = 0 : i64, scratch_operands = 0 : i64, tpu.core_type = #tpu.core_type<tc>, window_params = [{pipeline_mode = #tpu.pipeline_mode<synchronous>, transform_indices = @transform_0, window_bounds = array<i64: 16, 32>}, {pipeline_mode = #tpu.pipeline_mode<synchronous>, transform_indices = @transform_1, window_bounds = array<i64: 48, 32>}, {pipeline_mode = #tpu.pipeline_mode<synchronous>, transform_indices = @transform_2, window_bounds = array<i64: 1, 48>}, {pipeline_mode = #tpu.pipeline_mode<synchronous>, transform_indices = @transform_3, window_bounds = array<i64: 16, 48>}]} {
    %c0 = arith.constant 0 : index
    %c0_0 = arith.constant 0 : index
    %0 = vector.load %arg1[%c0, %c0_0] : memref<16x32xf32, #tpu.memory_space<vmem>>, vector<16x32xf32>
    %c0_1 = arith.constant 0 : index
    %c0_2 = arith.constant 0 : index
    %1 = vector.load %arg2[%c0_1, %c0_2] : memref<48x32xf32, #tpu.memory_space<vmem>>, vector<48x32xf32>
    %cst = arith.constant dense<0.000000e+00> : vector<16x48xf32>
    %2 = tpu.matmul %0, %1, %cst {dimension_numbers = #tpu.dot_dimension_numbers<[1], [1], [0], [0], [0, 0, 1, 0], [], []>} : vector<16x32xf32>, vector<48x32xf32>, vector<16x48xf32> -> vector<16x48xf32>
    %c0_3 = arith.constant 0 : index
    %c0_4 = arith.constant 0 : index
    %3 = vector.load %arg3[%c0_3, %c0_4] : memref<1x48xf32, #tpu.memory_space<vmem>>, vector<1x48xf32>
    %4 = vector.broadcast %3 : vector<1x48xf32> to vector<16x48xf32>
    %5 = arith.addf %2, %4 : vector<16x48xf32>
    %c0_5 = arith.constant 0 : index
    %c0_6 = arith.constant 0 : index
    %6 = vector.load %arg4[%c0_5, %c0_6] : memref<16x48xf32, #tpu.memory_space<vmem>>, vector<16x48xf32>
    tpu.vector_store %arg4[%c0_5, %c0_6], %5 {strides = array<i32>} : memref<16x48xf32, #tpu.memory_space<vmem>>, vector<16x48xf32>,
    return
  }
  func.func @transform_0(%arg0: i32) -> (i32, i32) {
    %c0_i32 = arith.constant 0 : i32
    %c0_i32_0 = arith.constant 0 : i32
    %c0_i32_1 = arith.constant 0 : i32
    return %c0_i32, %c0_i32_0 : i32, i32
  }
  func.func @transform_1(%arg0: i32) -> (i32, i32) {
    %c0_i32 = arith.constant 0 : i32
    %c0_i32_0 = arith.constant 0 : i32
    %c0_i32_1 = arith.constant 0 : i32
    return %c0_i32, %c0_i32_0 : i32, i32
  }
  func.func @transform_2(%arg0: i32) -> (i32, i32) {
    %c0_i32 = arith.constant 0 : i32
    %c0_i32_0 = arith.constant 0 : i32
    %c0_i32_1 = arith.constant 0 : i32
    return %c0_i32, %c0_i32_0 : i32, i32
  }
  func.func @transform_3(%arg0: i32) -> (i32, i32) {
    %c0_i32 = arith.constant 0 : i32
    %c0_i32_0 = arith.constant 0 : i32
    %c0_i32_1 = arith.constant 0 : i32
    return %c0_i32, %c0_i32_0 : i32, i32
  }
}

</mosaic_0001>

<llo_original>
// kernel: linear_pallas.1
$region0: #{linear_pallas.1}
  #allocation0 [shape = 'u32[]', space=smem, size = 0x4, offset = 0x4, fixed_abs, tag = 'smem constant byte address 0x4 - core index']
  #allocation1 [shape = 'u32[144,128]{1,0:T(1,128)}', space=vmem, size = 0x12000, scoped, tag = 'internal scratch']
  %s0 = inlined_call_operand.vmem [shape: f32[16,32], index: 0, kind: input, shape index: {}]
  %s1 = inlined_call_operand.vmem [shape: f32[48,32], index: 1, kind: input, shape index: {}]
  %s2 = inlined_call_operand.vmem [shape: f32[1,48], index: 2, kind: input, shape index: {}]
  %s3 = inlined_call_operand.hbm [shape: f32[16,48], index: 3, kind: output, shape index: {}]
  %s4 = sld [smem:[#allocation0]]
  $region22: #{linear_pallas.1} parent=0
    _
  %s6 = ssub.s32 1, %s4
  %s7 = scalar_select 0, %s6, %s4
  $region1: #{linear_pallas.1} parent=0
    #allocation2 [shape = 'u8[8192]{0}', space=vmem, size = 0x2000, scoped, tag = 'output window, operand 0, single buffered']
    #allocation3 [shape = 's32[1]{0}', space=sflag, size = 0x4, scoped, tag = 'scoped memory for linear_pallas.1']
    %8 = vsyncpa [#allocation3], 0
    // Predicated region
    $region2: #{linear_pallas.1} parent=1 // pred_check
      _
    $region3: #{linear_pallas.1} parent=1 // pred_check_branch
      %10 = sbr.rel (0) target = $region5
    $region4: #{linear_pallas.1} parent=1 // pred_region
      _
    $region5: #{linear_pallas.1} parent=1 // pred_fallthru
      _
    // Predicated region
    $region6: #{linear_pallas.1} parent=1 // pred_check
      _
    $region7: #{linear_pallas.1} parent=1 // pred_check_branch
      %12 = sbr.rel (0) target = $region9
    $region8: #{linear_pallas.1} parent=1 // pred_region
      _
    $region9: #{linear_pallas.1} parent=1 // pred_fallthru
      _
    // Predicated region
    $region10: #{linear_pallas.1} parent=1 // pred_check
      _
    $region11: #{linear_pallas.1} parent=1 // pred_check_branch
      %14 = sbr.rel (0) target = $region13
    $region12: #{linear_pallas.1} parent=1 // pred_region
      _
    $region13: #{linear_pallas.1} parent=1 // pred_fallthru
      _
    %v15 = vld [vmem:[%s0] sm:$0xff]
    %v16 = vld [vmem:[%s0 + $0x8] sm:$0xff]
    %v17 = vld [vmem:[%s1] sm:$0xff]
    %v18 = vld [vmem:[%s1 + $0x8] sm:$0xff]
    %v19 = vld [vmem:[%s1 + $0x10] sm:$0xff]
    %v20 = vld [vmem:[%s1 + $0x18] sm:$0xff]
    %v21 = vld [vmem:[%s1 + $0x20] sm:$0xff]
    %v22 = vld [vmem:[%s1 + $0x28] sm:$0xff]
    %v23 = vld [vmem:[%s2] sm:$0x1]
    %v25 = vlaneseq
    %v26 = vshrl.u32 %v25, 7
    %v27 = vsub.s32 0, %v26
    %v28 = vrot.slane %v23, %v27
    %vm30 = vcmask 261120
    %v32 = vsel %vm30, %v15, 0
    %v35 = vsel %vm30, %v16, 0
    %v38 = vsel %vm30, %v17, 0
    %v41 = vsel %vm30, %v18, 0
    %v44 = vsel %vm30, %v19, 0
    %v47 = vsel %vm30, %v20, 0
    %v50 = vsel %vm30, %v21, 0
    %v53 = vsel %vm30, %v22, 0
    %55 = vmatprep.subr.mxu0 0.0
    %56 = vmatpush1.xpose.msra.mxu0 0.0
    %57 = vmatprep.subr.mxu0 0.0
    %58 = vmatpush1.xpose.msra.mxu0 0.0
    %59 = vmatprep.subr.mxu0 0.0
    %60 = vmatpush1.xpose.msra.mxu0 0.0
    %61 = vmatprep.subr.mxu0 0.0
    %62 = vmatpush1.xpose.msra.mxu0 0.0
    %63 = vmatprep.subr.mxu0 0.0
    %64 = vmatpush1.xpose.msra.mxu0 0.0
    %65 = vmatprep.subr.mxu0 0.0
    %66 = vmatpush1.xpose.msra.mxu0 0.0
    %67 = vmatprep.subr.mxu0 0.0
    %68 = vmatpush1.xpose.msra.mxu0 0.0
    %69 = vmatprep.subr.mxu0 0.0
    %70 = vmatpush1.xpose.msra.mxu0 0.0
    %71 = vmatprep.subr.mxu0 0.0
    %72 = vmatpush1.xpose.msra.mxu0 0.0
    %73 = vmatprep.subr.mxu0 0.0
    %74 = vmatpush1.xpose.msra.mxu0 0.0
    %75 = vmatprep.subr.mxu0 0.0
    %76 = vmatpush1.xpose.msra.mxu0 %v53
    %77 = vmatprep.subr.mxu0 0.0
    %78 = vmatpush1.xpose.msra.mxu0 %v50
    %79 = vmatprep.subr.mxu0 0.0
    %80 = vmatpush1.xpose.msra.mxu0 %v47
    %81 = vmatprep.subr.mxu0 0.0
    %82 = vmatpush1.xpose.msra.mxu0 %v44
    %83 = vmatprep.subr.mxu0 0.0
    %84 = vmatpush1.xpose.msra.mxu0 %v41
    %85 = vmatprep.subr.mxu0 0.0
    %86 = vmatpush1.xpose.msra.mxu0 %v38
    %87 = vmatprep.subr.mxu0 0.0
    %88 = vmatpush2.xpose.msra.mxu0 0.0
    %89 = vmatprep.subr.mxu0 0.0
    %90 = vmatpush2.xpose.msra.mxu0 0.0
    %91 = vmatprep.subr.mxu0 0.0
    %92 = vmatpush2.xpose.msra.mxu0 0.0
    %93 = vmatprep.subr.mxu0 0.0
    %94 = vmatpush2.xpose.msra.mxu0 0.0
    %95 = vmatprep.subr.mxu0 0.0
    %96 = vmatpush2.xpose.msra.mxu0 0.0
    %97 = vmatprep.subr.mxu0 0.0
    %98 = vmatpush2.xpose.msra.mxu0 0.0
    %99 = vmatprep.subr.mxu0 0.0
    %100 = vmatpush2.xpose.msra.mxu0 0.0
    %101 = vmatprep.subr.mxu0 0.0
    %102 = vmatpush2.xpose.msra.mxu0 0.0
    %103 = vmatprep.subr.mxu0 0.0
    %104 = vmatpush2.xpose.msra.mxu0 0.0
    %105 = vmatprep.subr.mxu0 0.0
    %106 = vmatpush2.xpose.msra.mxu0 0.0
    %107 = vmatprep.subr.mxu0 0.0
    %108 = vmatpush2.xpose.msra.mxu0 0.0
    %109 = vmatprep.subr.mxu0 0.0
    %110 = vmatpush2.xpose.msra.mxu0 0.0
    %111 = vmatprep.subr.mxu0 0.0
    %112 = vmatpush2.xpose.msra.mxu0 0.0
    %113 = vmatprep.subr.mxu0 0.0
    %114 = vmatpush2.xpose.msra.mxu0 0.0
    %115 = vmatprep.subr.mxu0 0.0
    %116 = vmatpush2.xpose.msra.mxu0 0.0
    %117 = vmatprep.subr.mxu0 0.0
    %118 = vmatpush2.xpose.msra.mxu0 0.0
    %119 = vmatprep.mubr.f32.mxu0 0.0
    %120 = vmatmul.mubr.f32.gmra.mxu0 %v32
    %v121 = vpop.f32.mrf.mxu0
    %v122 = vadd.f32 %v28, %v121
    %v123 = vpop.f32.mrf.mxu0
    %124 = vmatprep.mubr.f32.mxu0 0.0
    %125 = vmatmul.mubr.f32.gmra.mxu0 %v35
    %v126 = vpop.f32.mrf.mxu0
    %v127 = vadd.f32 %v28, %v126
    %v128 = vpop.f32.mrf.mxu0
    %129 = vdwg.mxu0
    %vm130 = vcmask 392192
    %131 = vst.msk [vmem:[#allocation2] sm:$0xff] %vm130, %v122
    %132 = vst.msk [vmem:[#allocation2 + $0x8] sm:$0xff] %vm130, %v127
    // Predicated region
    $region14: #{linear_pallas.1} parent=1 // pred_check
      _
    $region15: #{linear_pallas.1} parent=1 // pred_check_branch
      %134 = sbr.rel (0) target = $region17
    $region16: #{linear_pallas.1} parent=1 // pred_region
      %s136 = ssub.s32 256, 256
      %137 = vsyncadd [#allocation3], %s136
      %s138 = sshll.u32 [#allocation2], 4
      %s139 = int_to_ptr.vmem [resolvable:$true] %s138
      %144 = dma.vmem_to_hbm [thread:$0]  %s139, 256, %s3, [#allocation3], 128, 128, 8
    $region17: #{linear_pallas.1} parent=1 // pred_fallthru
      _
    // Predicated region
    $region18: #{linear_pallas.1} parent=1 // pred_check
      _
    $region19: #{linear_pallas.1} parent=1 // pred_check_branch
      %146 = sbr.rel (0) target = $region21
    $region20: #{linear_pallas.1} parent=1 // pred_region
      %147 = dma.done [#allocation3], 256
    $region21: #{linear_pallas.1} parent=1 // pred_fallthru
      _
    %148 = vsyncpa [#allocation3], 1

</llo_original>
